<compile_context>
chip_gen: v7x
topology: tpu7x:2x2x1
jax: 0.10.0
libtpu: 0.0.40
codegen_flags: <defaults>
</compile_context>

<pallas_src>
import functools
import numpy as np
import jax
import jax.numpy as jnp
from jax.experimental import pallas as pl
from jax.experimental.pallas import tpu as pltpu

LANE = 128
VMEM_LIMIT_BYTES = 48 * 1024 * 1024    # scoped VMEM request (under v7x 64 MiB)
TILE_BUDGET_BYTES = 12 * 1024 * 1024   # target for double-buffered block bytes


def _round_up(x, m=LANE):
    return ((x + m - 1) // m) * m


def _pad_axis(a, axis, target):
    pad = target - a.shape[axis]
    if pad <= 0:
        return a
    widths = [(0, 0)] * a.ndim
    widths[axis] = (0, pad)
    return jnp.pad(a, widths)


# ---------------------------------------------------------------------------
# Kernel 1: RelGraphConv (basis regularizer), block-diagonal batched graph.
#   per graph g:  out[g] = sum_r A_blocks[g, r] @ (H[g] @ W_r) + bias
#   grid = (graph tiles,)  -> "parallel" (megacore shards it)
#   HW for a graph is computed exactly once (its H lives only in its own tile),
#   and partials are accumulated per relation -> no (RN, Dout) scratch.
# ---------------------------------------------------------------------------
def _rgcn_kernel(a_ref, h_ref, w_ref, b_ref, o_ref, *, num_rel, apply_relu):
    a = a_ref[...]                                   # (gt, R, n, n)   bf16
    h = h_ref[...]                                   # (gt, n, Din)    bf16
    w = w_ref[...]                                   # (R, Din, Dout)  bf16
    gt, n, din = h.shape
    dout = w.shape[-1]

    h_flat = h.reshape(gt * n, din)
    acc = jnp.zeros((gt, n, dout), jnp.float32)
    for r in range(num_rel):                         # static unroll (small R)
        hw = jnp.dot(h_flat, w[r], preferred_element_type=jnp.float32)
        hw = hw.reshape(gt, n, dout).astype(jnp.bfloat16)
        acc = acc + jnp.einsum("gvu,guo->gvo", a[:, r], hw,
                               preferred_element_type=jnp.float32)
    out = acc + b_ref[...]
    if apply_relu:
        out = jnp.maximum(out, 0.0)
    o_ref[...] = out.astype(o_ref.dtype)


def rel_graph_conv(A_blocks, H, W, b, *, apply_relu):
    G, n, Din_p = H.shape
    R = W.shape[0]
    Dout_p = _round_up(W.shape[2])
    # Zero-pad weight/bias to lane-aligned feature widths (mathematically exact).
    Wp = _pad_axis(_pad_axis(W, 1, Din_p), 2, Dout_p).astype(jnp.bfloat16)
    bp = _pad_axis(b, 1, Dout_p).astype(jnp.float32)

    # Graph-tile size from a VMEM budget (blocks are double-buffered by Pallas).
    per_graph = 2 * n * (R * n + Din_p + Dout_p)           # bf16 in/out bytes
    fixed = 2 * R * Din_p * Dout_p + 4 * Dout_p            # weights + bias
    gt = int(max(1, min(G, (TILE_BUDGET_BYTES - 2 * fixed) // (2 * per_graph))))

    Gp = -(-G // gt) * gt                                   # pad non-divisible G
    if Gp != G:
        A_blocks = _pad_axis(A_blocks, 0, Gp)               # zero graphs (exact)
        H = _pad_axis(H, 0, Gp)

    kernel = functools.partial(_rgcn_kernel, num_rel=R, apply_relu=apply_relu)
    out = pl.pallas_call(
        kernel,
        out_shape=jax.ShapeDtypeStruct((Gp, n, Dout_p), jnp.bfloat16),
        grid_spec=pltpu.PrefetchScalarGridSpec(
            num_scalar_prefetch=0,
            grid=(Gp // gt,),
            in_specs=[
                pl.BlockSpec((gt, R, n, n), lambda i: (i, 0, 0, 0)),   # A blocks
                pl.BlockSpec((gt, n, Din_p), lambda i: (i, 0, 0)),     # H tile
                pl.BlockSpec((R, Din_p, Dout_p), lambda i: (0, 0, 0)), # W (const)
                pl.BlockSpec((1, Dout_p), lambda i: (0, 0)),           # bias
            ],
            out_specs=pl.BlockSpec((gt, n, Dout_p), lambda i: (i, 0, 0)),
        ),
        compiler_params=pltpu.CompilerParams(
            dimension_semantics=("parallel",),
            vmem_limit_bytes=VMEM_LIMIT_BYTES),
    )(A_blocks, H, Wp, bp)
    return out[:G]


# ---------------------------------------------------------------------------
# Kernel 2: fused head — (M @ enc) gather -> dense -> add node features
#           -> GlobalAttentionPooling -> MLP(200->100->64->1) -> sigmoid
#   grid = (graph blocks,)  -> "parallel"
# ---------------------------------------------------------------------------
def _head_kernel(enc_ref, m_ref, h_ref, wd_ref, bd_ref, wg_ref, bg_ref,
                 w1_ref, b1_ref, w2_ref, b2_ref, w3_ref, b3_ref, o_ref):
    gb, S, Hid = enc_ref.shape
    _, n, Dp = h_ref.shape

    # (1) gather-before-dense (exact by linearity): tokens -> nodes first.
    m = m_ref[...]                                              # (gb, n, S)
    gathered = jnp.einsum("gns,gsh->gnh", m, enc_ref[...],
                          preferred_element_type=jnp.float32)   # (gb, n, Hid)
    # (2) dense on the gathered node rows: one flat lane-dense MXU matmul.
    gathered = gathered.reshape(gb * n, Hid).astype(jnp.bfloat16)
    dense_enc = jnp.dot(gathered, wd_ref[...],
                        preferred_element_type=jnp.float32).reshape(gb, n, Dp)
    # bias only for nodes with a non-empty ids list (torch: empty -> zeros);
    # row-sum(M) is ~1 for mapped nodes and exactly 0 for unmapped ones.
    has_ids = jnp.sum(m.astype(jnp.float32), axis=-1, keepdims=True)
    dense_enc = dense_enc + has_ids * bd_ref[...]
    hg = h_ref[...].astype(jnp.float32) + dense_enc             # (gb, n, Dp) f32

    # (3) GlobalAttentionPooling: gate = VPU multiply + lane reduce (no 1-col
    #     matmul); softmax over the nodes of each graph; all f32 (v5e-friendly).
    gate = jnp.sum(hg * wg_ref[...], axis=-1, keepdims=True) + bg_ref[...]
    gate = gate - jnp.max(gate, axis=1, keepdims=True)
    eg = jnp.exp(gate)
    sm = eg * pl.reciprocal(jnp.sum(eg, axis=1, keepdims=True), approx=True)
    readout = jnp.sum(hg * sm, axis=1)                          # (gb, Dp)

    # (4) MLP classifier (tiny, kept f32 to avoid cast round trips) + sigmoid.
    x = jnp.dot(readout, w1_ref[...], preferred_element_type=jnp.float32) + b1_ref[...]
    x = jnp.maximum(x, 0.0)
    x = jnp.dot(x, w2_ref[...], preferred_element_type=jnp.float32) + b2_ref[...]
    x = jnp.maximum(x, 0.0)
    x = jnp.dot(x, w3_ref[...], preferred_element_type=jnp.float32) + b3_ref[...]
    o_ref[...] = jax.nn.sigmoid(x).astype(o_ref.dtype)


def fused_head(enc, M, W_dense, b_dense, h_graphs, w_gate, b_gate, mlp_params):
    G, S, Hid = enc.shape
    n = M.shape[1]
    Dp = h_graphs.shape[2]                                      # padded out_dim
    w1, b1, w2, b2, w3, b3 = mlp_params
    H1 = _round_up(w1.shape[1])                                 # 100 -> 128
    H2 = _round_up(w2.shape[1])                                 # 64  -> 128
    H3 = _round_up(w3.shape[1])                                 # 1   -> 128

    # Zero-pad all head weights to lane-dense widths (exact).
    Wd = _pad_axis(W_dense, 1, Dp).astype(jnp.bfloat16)
    bd = _pad_axis(b_dense, 1, Dp).astype(jnp.float32)
    wg = _pad_axis(w_gate.T, 1, Dp).astype(jnp.float32)         # (1, Dp)
    bg = b_gate.astype(jnp.float32)                             # (1, 1)
    w1p = _pad_axis(_pad_axis(w1, 0, Dp), 1, H1).astype(jnp.float32)
    b1p = _pad_axis(b1, 1, H1).astype(jnp.float32)
    w2p = _pad_axis(_pad_axis(w2, 0, H1), 1, H2).astype(jnp.float32)
    b2p = _pad_axis(b2, 1, H2).astype(jnp.float32)
    w3p = _pad_axis(_pad_axis(w3, 0, H2), 1, H3).astype(jnp.float32)
    b3p = _pad_axis(b3, 1, H3).astype(jnp.float32)

    # Graph-block size from a VMEM budget; pad G up so the grid always tiles.
    per_graph = 2 * (S * Hid + n * S + n * Dp) + 4 * H3
    fixed = (2 * Hid * Dp
             + 4 * (2 * Dp + 1 + Dp * H1 + H1 + H1 * H2 + H2 + H2 * H3 + H3))
    gb = int(max(1, min(G, (TILE_BUDGET_BYTES - 2 * fixed) // (2 * per_graph))))
    Gp = -(-G // gb) * gb
    enc_p = _pad_axis(enc, 0, Gp).astype(jnp.bfloat16)
    M_p = _pad_axis(M, 0, Gp).astype(jnp.bfloat16)
    h_p = _pad_axis(h_graphs, 0, Gp)

    out = pl.pallas_call(
        _head_kernel,
        out_shape=jax.ShapeDtypeStruct((Gp, H3), jnp.float32),
        grid_spec=pltpu.PrefetchScalarGridSpec(
            num_scalar_prefetch=0,
            grid=(Gp // gb,),
            in_specs=[
                pl.BlockSpec((gb, S, Hid), lambda i: (i, 0, 0)),   # enc
                pl.BlockSpec((gb, n, S), lambda i: (i, 0, 0)),     # M
                pl.BlockSpec((gb, n, Dp), lambda i: (i, 0, 0)),    # h_graphs
                pl.BlockSpec((Hid, Dp), lambda i: (0, 0)),         # W_dense
                pl.BlockSpec((1, Dp), lambda i: (0, 0)),           # b_dense
                pl.BlockSpec((1, Dp), lambda i: (0, 0)),           # w_gate
                pl.BlockSpec((1, 1), lambda i: (0, 0)),            # b_gate
                pl.BlockSpec((Dp, H1), lambda i: (0, 0)),          # w1
                pl.BlockSpec((1, H1), lambda i: (0, 0)),           # b1
                pl.BlockSpec((H1, H2), lambda i: (0, 0)),          # w2
                pl.BlockSpec((1, H2), lambda i: (0, 0)),           # b2
                pl.BlockSpec((H2, H3), lambda i: (0, 0)),          # w3
                pl.BlockSpec((1, H3), lambda i: (0, 0)),           # b3
            ],
            out_specs=pl.BlockSpec((gb, H3), lambda i: (i, 0)),
        ),
        compiler_params=pltpu.CompilerParams(
            dimension_semantics=("parallel",),
            vmem_limit_bytes=VMEM_LIMIT_BYTES),
    )(enc_p, M_p, h_p, Wd, bd, wg, bg, w1p, b1p, w2p, b2p, w3p, b3p)
    return out[:G, 0]                                           # .squeeze(dim=-1)


# ---------------------------------------------------------------------------
# Full BertWithGAP forward (dropout p=0.0 -> identity; self_loop=False;
# equal-size graphs per batch, as produced by the data pipeline).
# ---------------------------------------------------------------------------
def forward(params, A, x, enc_out, M):
    R, N, _ = A.shape
    G, n, S = M.shape
    assert N == G * n

    # Per-graph adjacency blocks (batched DGL graphs are block-diagonal):
    #   A_blocks[g, r, i, j] = A[r, g*n+i, g*n+j]
    # bf16 *before* the re-layout; built once and reused by every RGCN layer.
    gidx = jnp.arange(G)
    A_blocks = A.astype(jnp.bfloat16).reshape(R, G, n, G, n)[:, gidx, :, gidx, :]

    basis_w = lambda coef, basis: jnp.einsum("rb,bio->rio", coef, basis)  # glue

    h = _pad_axis(x, 1, _round_up(x.shape[1])).astype(jnp.bfloat16)
    h = h.reshape(G, n, -1)
    coef, basis, bias = params["in_layer"]
    h = rel_graph_conv(A_blocks, h, basis_w(coef, basis), bias, apply_relu=True)
    for coef, basis, bias in params["h_layers"]:
        h = rel_graph_conv(A_blocks, h, basis_w(coef, basis), bias, apply_relu=True)
    coef, basis, bias = params["out_layer"]
    h = rel_graph_conv(A_blocks, h, basis_w(coef, basis), bias, apply_relu=False)

    return fused_head(enc_out, M, params["dense"][0], params["dense"][1],
                      h, params["gate"][0], params["gate"][1], params["mlp"])


# Pure-JAX (float32) reference for correctness checking (original op order:
# dense(enc) first, then the node-ids gather/mean, dense A einsum for RGCN).
def forward_ref(params, A, x, enc_out, M):
    def rgcn(A, H, coef, basis, b, relu):
        W = jnp.einsum("rb,bio->rio", coef, basis)
        out = jnp.einsum("rvu,ui,rio->vo", A, H, W) + b
        return jnp.maximum(out, 0.0) if relu else out

    h = rgcn(A, x, *params["in_layer"], True)
    for layer in params["h_layers"]:
        h = rgcn(A, h, *layer, True)
    h = rgcn(A, h, *params["out_layer"], False)

    G, n, S = M.shape
    hg = h.reshape(G, n, -1)
    enc_d = jnp.einsum("gsh,hd->gsd", enc_out, params["dense"][0]) + params["dense"][1]
    hg = hg + jnp.einsum("gns,gsd->gnd", M, enc_d)

    gate = jnp.einsum("gnd,do->gno", hg, params["gate"][0]) + params["gate"][1]
    sm = jax.nn.softmax(gate, axis=1)
    readout = jnp.sum(hg * sm, axis=1)

    w1, b1, w2, b2, w3, b3 = params["mlp"]
    y = jnp.maximum(readout @ w1 + b1, 0.0)
    y = jnp.maximum(y @ w2 + b2, 0.0)
    y = y @ w3 + b3
    return jax.nn.sigmoid(y)[:, 0]


if __name__ == "__main__":
    G, n, R, B = 2, 8, 3, 3            # graphs, nodes/graph, relations, bases
    N = G * n
    input_dim, h_dim, out_dim = 64, 128, 200
    hidden_size, S = 64, 8             # config.hidden_size, encoder seq len

    key = jax.random.PRNGKey(0)
    keys = jax.random.split(key, 20)

    def lin(k, shape, scale=None):
        if scale is None:
            scale = 1.0 / np.sqrt(shape[0])
        return jax.random.normal(k, shape, jnp.float32) * scale

    params = {
        "in_layer": (lin(keys[0], (R, B)), lin(keys[1], (B, input_dim, h_dim)),
                     jnp.full((1, h_dim), 0.01, jnp.float32)),
        "h_layers": [(lin(keys[2], (R, B)), lin(keys[3], (B, h_dim, h_dim)),
                      jnp.full((1, h_dim), 0.01, jnp.float32))],
        "out_layer": (lin(keys[4], (R, B)), lin(keys[5], (B, h_dim, out_dim)),
                      jnp.full((1, out_dim), 0.01, jnp.float32)),
        "dense": (lin(keys[6], (hidden_size, out_dim)), lin(keys[7], (1, out_dim), 0.01)),
        "gate": (lin(keys[8], (out_dim, 1)), lin(keys[9], (1, 1), 0.01)),
        "mlp": (lin(keys[10], (out_dim, 100)), lin(keys[11], (1, 100), 0.01),
                lin(keys[12], (100, 64)), lin(keys[13], (1, 64), 0.01),
                lin(keys[14], (64, 1)), lin(keys[15], (1, 1), 0.01)),
    }

    # g.ndata['features'] and the frozen RoBERTa encoder output (see TODO above)
    x = jax.random.normal(keys[16], (N, input_dim), jnp.float32)
    enc_out = jax.random.normal(keys[17], (G, S, hidden_size), jnp.float32)

    # dense relational adjacency for the batched graph (block-diagonal, two
    # ring-ish graphs — batched DGL graphs never have cross-graph edges)
    A_np = np.zeros((R, N, N), np.float32)
    for g in range(G):
        off = g * n
        for i in range(n):
            A_np[i % R, off + (i + 1) % n, off + i] = 1.0
            A_np[(i + 1) % R, off + (i + 2) % n, off + i] = 1.0
    A = jnp.asarray(A_np)

    # node_ids_map: node 0 averages tokens {0,1}; node i maps to token i;
    # the last node has an EMPTY ids list (all-zero row -> torch adds zeros).
    M_np = np.zeros((G, n, S), np.float32)
    for g in range(G):
        M_np[g, 0, 0] = 0.5
        M_np[g, 0, 1] = 0.5
        for i in range(1, n - 1):
            M_np[g, i, i] = 1.0
    M = jnp.asarray(M_np)

    out = jax.block_until_ready(forward(params, A, x, enc_out, M))
    ref = forward_ref(params, A, x, enc_out, M)
    # bf16 operands + EUP approx reciprocal -> loosened tolerance vs f32 ref.
    np.testing.assert_allclose(np.asarray(out), np.asarray(ref), rtol=5e-2, atol=5e-2)
    print("KERNEL_OK")
</pallas_src>

<mosaic_0001>
module attributes {stable_mosaic.version = 11 : i64} {
  func.func @_rgcn_kernel(%arg0: i32, %arg1: memref<2x3x8x8xbf16, #tpu.memory_space<vmem>>, %arg2: memref<2x8x128xbf16, #tpu.memory_space<vmem>>, %arg3: memref<3x128x128xbf16, #tpu.memory_space<vmem>>, %arg4: memref<1x128xf32, #tpu.memory_space<vmem>>, %arg5: memref<2x8x128xbf16, #tpu.memory_space<vmem>>) attributes {dimension_semantics = [#tpu.dimension_semantics<parallel>], iteration_bounds = array<i64: 1>, scalar_prefetch = 0 : i64, scratch_operands = 0 : i64, tpu.core_type = #tpu.core_type<tc>, window_params = [{transform_indices = @transform_0, window_bounds = array<i64: 2, 3, 8, 8>}, {transform_indices = @transform_1, window_bounds = array<i64: 2, 8, 128>}, {pipeline_mode = #tpu.pipeline_mode<synchronous>, transform_indices = @transform_2, window_bounds = array<i64: 3, 128, 128>}, {pipeline_mode = #tpu.pipeline_mode<synchronous>, transform_indices = @transform_3, window_bounds = array<i64: 1, 128>}, {transform_indices = @transform_4, window_bounds = array<i64: 2, 8, 128>}]} {
    %c0 = arith.constant 0 : index
    %c0_0 = arith.constant 0 : index
    %c0_1 = arith.constant 0 : index
    %c0_2 = arith.constant 0 : index
    %0 = vector.load %arg1[%c0, %c0_0, %c0_1, %c0_2] : memref<2x3x8x8xbf16, #tpu.memory_space<vmem>>, vector<2x3x8x8xbf16>
    %c0_3 = arith.constant 0 : index
    %c0_4 = arith.constant 0 : index
    %c0_5 = arith.constant 0 : index
    %1 = vector.load %arg2[%c0_3, %c0_4, %c0_5] : memref<2x8x128xbf16, #tpu.memory_space<vmem>>, vector<2x8x128xbf16>
    %c0_6 = arith.constant 0 : index
    %c0_7 = arith.constant 0 : index
    %c0_8 = arith.constant 0 : index
    %2 = vector.load %arg3[%c0_6, %c0_7, %c0_8] : memref<3x128x128xbf16, #tpu.memory_space<vmem>>, vector<3x128x128xbf16>
    %3 = vector.shape_cast %1 : vector<2x8x128xbf16> to vector<16x128xbf16>
    %cst = arith.constant 0.000000e+00 : f32
    %4 = vector.broadcast %cst : f32 to vector<2x8x128xf32>
    %5 = vector.extract_strided_slice %2 {offsets = [0, 0, 0], sizes = [1, 128, 128], strides = [1, 1, 1]} : vector<3x128x128xbf16> to vector<1x128x128xbf16>
    %6 = vector.shape_cast %5 : vector<1x128x128xbf16> to vector<128x128xbf16>
    %cst_9 = arith.constant dense<0.000000e+00> : vector<16x128xf32>
    %7 = tpu.matmul %3, %6, %cst_9 {dimension_numbers = #tpu.dot_dimension_numbers<[1], [0], [0], [1], [0, 0, 1, 1], [], []>} : vector<16x128xbf16>, vector<128x128xbf16>, vector<16x128xf32> -> vector<16x128xf32>
    %8 = vector.shape_cast %7 : vector<16x128xf32> to vector<2x8x128xf32>
    %9 = arith.truncf %8 : vector<2x8x128xf32> to vector<2x8x128xbf16>
    %10 = vector.extract_strided_slice %0 {offsets = [0, 0, 0, 0], sizes = [2, 1, 8, 8], strides = [1, 1, 1, 1]} : vector<2x3x8x8xbf16> to vector<2x1x8x8xbf16>
    %11 = vector.shape_cast %10 : vector<2x1x8x8xbf16> to vector<2x8x8xbf16>
    "tpu.trace_start"() <{level = 10 : i32, message = "gvu,guo->gvo"}> : () -> ()
    %cst_10 = arith.constant dense<0.000000e+00> : vector<2x8x128xf32>
    %12 = tpu.matmul %11, %9, %cst_10 {dimension_numbers = #tpu.dot_dimension_numbers<[2], [1], [1], [2], [0, 0, 0, 1, 1, 2], [0], [0]>} : vector<2x8x8xbf16>, vector<2x8x128xbf16>, vector<2x8x128xf32> -> vector<2x8x128xf32>
    "tpu.trace_stop"() : () -> ()
    %13 = arith.addf %4, %12 : vector<2x8x128xf32>
    %14 = vector.extract_strided_slice %2 {offsets = [1, 0, 0], sizes = [1, 128, 128], strides = [1, 1, 1]} : vector<3x128x128xbf16> to vector<1x128x128xbf16>
    %15 = vector.shape_cast %14 : vector<1x128x128xbf16> to vector<128x128xbf16>
    %cst_11 = arith.constant dense<0.000000e+00> : vector<16x128xf32>
    %16 = tpu.matmul %3, %15, %cst_11 {dimension_numbers = #tpu.dot_dimension_numbers<[1], [0], [0], [1], [0, 0, 1, 1], [], []>} : vector<16x128xbf16>, vector<128x128xbf16>, vector<16x128xf32> -> vector<16x128xf32>
    %17 = vector.shape_cast %16 : vector<16x128xf32> to vector<2x8x128xf32>
    %18 = arith.truncf %17 : vector<2x8x128xf32> to vector<2x8x128xbf16>
    %19 = vector.extract_strided_slice %0 {offsets = [0, 1, 0, 0], sizes = [2, 1, 8, 8], strides = [1, 1, 1, 1]} : vector<2x3x8x8xbf16> to vector<2x1x8x8xbf16>
    %20 = vector.shape_cast %19 : vector<2x1x8x8xbf16> to vector<2x8x8xbf16>
    "tpu.trace_start"() <{level = 10 : i32, message = "gvu,guo->gvo"}> : () -> ()
    %cst_12 = arith.constant dense<0.000000e+00> : vector<2x8x128xf32>
    %21 = tpu.matmul %20, %18, %cst_12 {dimension_numbers = #tpu.dot_dimension_numbers<[2], [1], [1], [2], [0, 0, 0, 1, 1, 2], [0], [0]>} : vector<2x8x8xbf16>, vector<2x8x128xbf16>, vector<2x8x128xf32> -> vector<2x8x128xf32>
    "tpu.trace_stop"() : () -> ()
    %22 = arith.addf %13, %21 : vector<2x8x128xf32>
    %23 = vector.extract_strided_slice %2 {offsets = [2, 0, 0], sizes = [1, 128, 128], strides = [1, 1, 1]} : vector<3x128x128xbf16> to vector<1x128x128xbf16>
    %24 = vector.shape_cast %23 : vector<1x128x128xbf16> to vector<128x128xbf16>
    %cst_13 = arith.constant dense<0.000000e+00> : vector<16x128xf32>
    %25 = tpu.matmul %3, %24, %cst_13 {dimension_numbers = #tpu.dot_dimension_numbers<[1], [0], [0], [1], [0, 0, 1, 1], [], []>} : vector<16x128xbf16>, vector<128x128xbf16>, vector<16x128xf32> -> vector<16x128xf32>
    %26 = vector.shape_cast %25 : vector<16x128xf32> to vector<2x8x128xf32>
    %27 = arith.truncf %26 : vector<2x8x128xf32> to vector<2x8x128xbf16>
    %28 = vector.extract_strided_slice %0 {offsets = [0, 2, 0, 0], sizes = [2, 1, 8, 8], strides = [1, 1, 1, 1]} : vector<2x3x8x8xbf16> to vector<2x1x8x8xbf16>
    %29 = vector.shape_cast %28 : vector<2x1x8x8xbf16> to vector<2x8x8xbf16>
    "tpu.trace_start"() <{level = 10 : i32, message = "gvu,guo->gvo"}> : () -> ()
    %cst_14 = arith.constant dense<0.000000e+00> : vector<2x8x128xf32>
    %30 = tpu.matmul %29, %27, %cst_14 {dimension_numbers = #tpu.dot_dimension_numbers<[2], [1], [1], [2], [0, 0, 0, 1, 1, 2], [0], [0]>} : vector<2x8x8xbf16>, vector<2x8x128xbf16>, vector<2x8x128xf32> -> vector<2x8x128xf32>
    "tpu.trace_stop"() : () -> ()
    %31 = arith.addf %22, %30 : vector<2x8x128xf32>
    %c0_15 = arith.constant 0 : index
    %c0_16 = arith.constant 0 : index
    %32 = vector.load %arg4[%c0_15, %c0_16] : memref<1x128xf32, #tpu.memory_space<vmem>>, vector<1x128xf32>
    %33 = vector.shape_cast %32 : vector<1x128xf32> to vector<1x1x128xf32>
    %34 = vector.broadcast %33 : vector<1x1x128xf32> to vector<2x8x128xf32>
    %35 = arith.addf %31, %34 : vector<2x8x128xf32>
    %cst_17 = arith.constant 0.000000e+00 : f32
    %36 = vector.broadcast %cst_17 : f32 to vector<2x8x128xf32>
    %37 = arith.maximumf %35, %36 : vector<2x8x128xf32>
    %38 = arith.truncf %37 : vector<2x8x128xf32> to vector<2x8x128xbf16>
    %c0_18 = arith.constant 0 : index
    %c0_19 = arith.constant 0 : index
    %c0_20 = arith.constant 0 : index
    %39 = vector.load %arg5[%c0_18, %c0_19, %c0_20] : memref<2x8x128xbf16, #tpu.memory_space<vmem>>, vector<2x8x128xbf16>
    tpu.vector_store %arg5[%c0_18, %c0_19, %c0_20], %38 {strides = array<i32>} : memref<2x8x128xbf16, #tpu.memory_space<vmem>>, vector<2x8x128xbf16>,
    return
  }
  func.func @transform_0(%arg0: i32) -> (i32, i32, i32, i32) {
    %c0_i32 = arith.constant 0 : i32
    %c0_i32_0 = arith.constant 0 : i32
    %c0_i32_1 = arith.constant 0 : i32
    %c0_i32_2 = arith.constant 0 : i32
    return %arg0, %c0_i32, %c0_i32_0, %c0_i32_1 : i32, i32, i32, i32
  }
  func.func @transform_1(%arg0: i32) -> (i32, i32, i32) {
    %c0_i32 = arith.constant 0 : i32
    %c0_i32_0 = arith.constant 0 : i32
    %c0_i32_1 = arith.constant 0 : i32
    return %arg0, %c0_i32, %c0_i32_0 : i32, i32, i32
  }
  func.func @transform_2(%arg0: i32) -> (i32, i32, i32) {
    %c0_i32 = arith.constant 0 : i32
    %c0_i32_0 = arith.constant 0 : i32
    %c0_i32_1 = arith.constant 0 : i32
    %c0_i32_2 = arith.constant 0 : i32
    return %c0_i32, %c0_i32_0, %c0_i32_1 : i32, i32, i32
  }
  func.func @transform_3(%arg0: i32) -> (i32, i32) {
    %c0_i32 = arith.constant 0 : i32
    %c0_i32_0 = arith.constant 0 : i32
    %c0_i32_1 = arith.constant 0 : i32
    return %c0_i32, %c0_i32_0 : i32, i32
  }
  func.func @transform_4(%arg0: i32) -> (i32, i32, i32) {
    %c0_i32 = arith.constant 0 : i32
    %c0_i32_0 = arith.constant 0 : i32
    %c0_i32_1 = arith.constant 0 : i32
    return %arg0, %c0_i32, %c0_i32_0 : i32, i32, i32
  }
}

</mosaic_0001>

<llo_original>
// kernel: tpu_custom_call.1
$region0: #{tpu_custom_call.1}
  #allocation0 [shape = 'u32[]', space=smem, size = 0x4, offset = 0x4, fixed_abs, tag = 'smem constant byte address 0x4 - core index']
  #allocation1 [shape = 'u32[144,128]{1,0:T(1,128)}', space=vmem, size = 0x12000, scoped, tag = 'internal scratch']
  %s0 = inlined_call_operand.hbm [shape: bf16[2,3,8,8], index: 0, kind: input, shape index: {}]
  %s1 = inlined_call_operand.hbm [shape: bf16[2,8,128], index: 1, kind: input, shape index: {}]
  %s2 = inlined_call_operand.hbm [shape: bf16[3,128,128], index: 2, kind: input, shape index: {}]
  %s3 = inlined_call_operand.vmem [shape: f32[1,128], index: 3, kind: input, shape index: {}]
  %s4 = inlined_call_operand.hbm [shape: bf16[2,8,128], index: 4, kind: output, shape index: {}]
  %s5 = sld [smem:[#allocation0]]
  $region38: #{tpu_custom_call.1} parent=0
    _
  %s7 = ssub.s32 1, %s5
  %s8 = scalar_select 0, %s7, %s5
  $region1: #{tpu_custom_call.1} parent=0
    #allocation2 [shape = 'u8[12288]{0}', space=vmem, size = 0x3000, scoped, tag = 'input window, operand 0, single buffered']
    #allocation3 [shape = 's32[1]{0}', space=sflag, size = 0x4, scoped, tag = 'scoped memory for tpu_custom_call.1']
    #allocation4 [shape = 's32[1]{0}', space=sflag, size = 0x4, scoped, tag = 'scoped memory for tpu_custom_call.1']
    #allocation5 [shape = 'u8[4096]{0}', space=vmem, size = 0x1000, scoped, tag = 'input window, operand 1, single buffered']
    #allocation6 [shape = 's32[1]{0}', space=sflag, size = 0x4, scoped, tag = 'scoped memory for tpu_custom_call.1']
    #allocation7 [shape = 'u8[98304]{0}', space=vmem, size = 0x18000, scoped, tag = 'input window, operand 2, single buffered']
    #allocation8 [shape = 'u8[4096]{0}', space=vmem, size = 0x1000, scoped, tag = 'output window, operand 0, single buffered']
    %9 = vsyncpa [#allocation3], 0
    %10 = vsyncpa [#allocation6], 0
    %11 = vsyncpa [#allocation4], 0
    // Predicated region
    $region2: #{tpu_custom_call.1} parent=1 // pred_check
      _
    $region3: #{tpu_custom_call.1} parent=1 // pred_check_branch
      %13 = sbr.rel (0) target = $region5
    $region4: #{tpu_custom_call.1} parent=1 // pred_region
      %s15 = ssub.s32 384, 384
      %16 = vsyncadd [#allocation3], %s15
      %s17 = sshll.u32 [#allocation2], 4
      %s18 = int_to_ptr.vmem [resolvable:$true] %s17
      %23 = dma.hbm_to_vmem [thread:$0]  %s0, 384, %s18, [#allocation3], 64, 64, 4
    $region5: #{tpu_custom_call.1} parent=1 // pred_fallthru
      _
    // Predicated region
    $region6: #{tpu_custom_call.1} parent=1 // pred_check
      _
    $region7: #{tpu_custom_call.1} parent=1 // pred_check_branch
      %25 = sbr.rel (0) target = $region9
    $region8: #{tpu_custom_call.1} parent=1 // pred_region
      %s27 = ssub.s32 128, 128
      %28 = vsyncadd [#allocation6], %s27
      %s29 = sshll.u32 [#allocation5], 4
      %s30 = int_to_ptr.vmem [resolvable:$true] %s29
      %35 = dma.hbm_to_vmem [thread:$0]  %s1, 128, %s30, [#allocation6], 64, 64, 4
    $region9: #{tpu_custom_call.1} parent=1 // pred_fallthru
      _
    // Predicated region
    $region10: #{tpu_custom_call.1} parent=1 // pred_check
      _
    $region11: #{tpu_custom_call.1} parent=1 // pred_check_branch
      %37 = sbr.rel (0) target = $region13
    $region12: #{tpu_custom_call.1} parent=1 // pred_region
      %s39 = ssub.s32 3072, 3072
      %40 = vsyncadd [#allocation6], %s39
      %s41 = sshll.u32 [#allocation7], 4
      %s42 = int_to_ptr.vmem [resolvable:$true] %s41
      %47 = dma.hbm_to_vmem [thread:$0]  %s2, 3072, %s42, [#allocation6], 64, 64, 4
    $region13: #{tpu_custom_call.1} parent=1 // pred_fallthru
      _
    // Predicated region
    $region14: #{tpu_custom_call.1} parent=1 // pred_check
      _
    $region15: #{tpu_custom_call.1} parent=1 // pred_check_branch
      %49 = sbr.rel (0) target = $region17
    $region16: #{tpu_custom_call.1} parent=1 // pred_region
      _
    $region17: #{tpu_custom_call.1} parent=1 // pred_fallthru
      _
    // Predicated region
    $region18: #{tpu_custom_call.1} parent=1 // pred_check
      _
    $region19: #{tpu_custom_call.1} parent=1 // pred_check_branch
      %51 = sbr.rel (0) target = $region21
    $region20: #{tpu_custom_call.1} parent=1 // pred_region
      %52 = dma.done [#allocation3], 384
    $region21: #{tpu_custom_call.1} parent=1 // pred_fallthru
      _
    // Predicated region
    $region22: #{tpu_custom_call.1} parent=1 // pred_check
      _
    $region23: #{tpu_custom_call.1} parent=1 // pred_check_branch
      %54 = sbr.rel (0) target = $region25
    $region24: #{tpu_custom_call.1} parent=1 // pred_region
      %55 = dma.done [#allocation6], 128
    $region25: #{tpu_custom_call.1} parent=1 // pred_fallthru
      _
    // Predicated region
    $region26: #{tpu_custom_call.1} parent=1 // pred_check
      _
    $region27: #{tpu_custom_call.1} parent=1 // pred_check_branch
      %57 = sbr.rel (0) target = $region29
    $region28: #{tpu_custom_call.1} parent=1 // pred_region
      %58 = dma.done [#allocation6], 3072
    $region29: #{tpu_custom_call.1} parent=1 // pred_fallthru
      _
    %v60 = vld [vmem:[#allocation2] sm:$0xf]
    %v61 = vld [vmem:[#allocation2 + $0x4] sm:$0xf]
    %v62 = vld [vmem:[#allocation2 + $0x8] sm:$0xf]
    %v63 = vld [vmem:[#allocation2 + $0xc] sm:$0xf]
    %v64 = vld [vmem:[#allocation2 + $0x10] sm:$0xf]
    %v65 = vld [vmem:[#allocation2 + $0x14] sm:$0xf]
    %v66 = vld [vmem:[#allocation5] sm:$0xf]
    %v67 = vld [vmem:[#allocation5 + $0x4] sm:$0xf]
    %v68 = vld [vmem:[#allocation7] sm:$0xf]
    %v69 = vld [vmem:[#allocation7 + $0x4] sm:$0xf]
    %v70 = vld [vmem:[#allocation7 + $0x8] sm:$0xf]
    %v71 = vld [vmem:[#allocation7 + $0xc] sm:$0xf]
    %v72 = vld [vmem:[#allocation7 + $0x10] sm:$0xf]
    %v73 = vld [vmem:[#allocation7 + $0x14] sm:$0xf]
    %v74 = vld [vmem:[#allocation7 + $0x18] sm:$0xf]
    %v75 = vld [vmem:[#allocation7 + $0x1c] sm:$0xf]
    %v76 = vld [vmem:[#allocation7 + $0x20] sm:$0xf]
    %v77 = vld [vmem:[#allocation7 + $0x24] sm:$0xf]
    %v78 = vld [vmem:[#allocation7 + $0x28] sm:$0xf]
    %v79 = vld [vmem:[#allocation7 + $0x2c] sm:$0xf]
    %v80 = vld [vmem:[#allocation7 + $0x30] sm:$0xf]
    %v81 = vld [vmem:[#allocation7 + $0x34] sm:$0xf]
    %v82 = vld [vmem:[#allocation7 + $0x38] sm:$0xf]
    %v83 = vld [vmem:[#allocation7 + $0x3c] sm:$0xf]
    %v84 = vld [vmem:[#allocation7 + $0x40] sm:$0xf]
    %v85 = vld [vmem:[#allocation7 + $0x44] sm:$0xf]
    %v86 = vld [vmem:[#allocation7 + $0x48] sm:$0xf]
    %v87 = vld [vmem:[#allocation7 + $0x4c] sm:$0xf]
    %v88 = vld [vmem:[#allocation7 + $0x50] sm:$0xf]
    %v89 = vld [vmem:[#allocation7 + $0x54] sm:$0xf]
    %v90 = vld [vmem:[#allocation7 + $0x58] sm:$0xf]
    %v91 = vld [vmem:[#allocation7 + $0x5c] sm:$0xf]
    %v92 = vld [vmem:[#allocation7 + $0x60] sm:$0xf]
    %v93 = vld [vmem:[#allocation7 + $0x64] sm:$0xf]
    %v94 = vld [vmem:[#allocation7 + $0x68] sm:$0xf]
    %v95 = vld [vmem:[#allocation7 + $0x6c] sm:$0xf]
    %v96 = vld [vmem:[#allocation7 + $0x70] sm:$0xf]
    %v97 = vld [vmem:[#allocation7 + $0x74] sm:$0xf]
    %v98 = vld [vmem:[#allocation7 + $0x78] sm:$0xf]
    %v99 = vld [vmem:[#allocation7 + $0x7c] sm:$0xf]
    %v100 = vld [vmem:[#allocation7 + $0x80] sm:$0xf]
    %v101 = vld [vmem:[#allocation7 + $0x84] sm:$0xf]
    %v102 = vld [vmem:[#allocation7 + $0x88] sm:$0xf]
    %v103 = vld [vmem:[#allocation7 + $0x8c] sm:$0xf]
    %v104 = vld [vmem:[#allocation7 + $0x90] sm:$0xf]
    %v105 = vld [vmem:[#allocation7 + $0x94] sm:$0xf]
    %v106 = vld [vmem:[#allocation7 + $0x98] sm:$0xf]
    %v107 = vld [vmem:[#allocation7 + $0x9c] sm:$0xf]
    %v108 = vld [vmem:[#allocation7 + $0xa0] sm:$0xf]
    %v109 = vld [vmem:[#allocation7 + $0xa4] sm:$0xf]
    %v110 = vld [vmem:[#allocation7 + $0xa8] sm:$0xf]
    %v111 = vld [vmem:[#allocation7 + $0xac] sm:$0xf]
    %v112 = vld [vmem:[#allocation7 + $0xb0] sm:$0xf]
    %v113 = vld [vmem:[#allocation7 + $0xb4] sm:$0xf]
    %v114 = vld [vmem:[#allocation7 + $0xb8] sm:$0xf]
    %v115 = vld [vmem:[#allocation7 + $0xbc] sm:$0xf]
    %v118 = vunpack.c.l.b16 %v66
    %v119 = vunpack.c.l.b16 %v67
    %v120 = vpack.c.b16 %v119, %v118
    %v138 = vunpack.c.l.b16 %v68
    %v139 = vunpack.c.l.b16 %v69
    %v140 = vunpack.c.l.b16 %v70
    %v141 = vunpack.c.l.b16 %v71
    %v142 = vunpack.c.l.b16 %v72
    %v143 = vunpack.c.l.b16 %v73
    %v144 = vunpack.c.l.b16 %v74
    %v145 = vunpack.c.l.b16 %v75
    %v146 = vunpack.c.l.b16 %v76
    %v147 = vunpack.c.l.b16 %v77
    %v148 = vunpack.c.l.b16 %v78
    %v149 = vunpack.c.l.b16 %v79
    %v150 = vunpack.c.l.b16 %v80
    %v151 = vunpack.c.l.b16 %v81
    %v152 = vunpack.c.l.b16 %v82
    %v153 = vunpack.c.l.b16 %v83
    %v154 = vpack.c.b16 %v139, %v138
    %v155 = vpack.c.b16 %v141, %v140
    %v156 = vpack.c.b16 %v143, %v142
    %v157 = vpack.c.b16 %v145, %v144
    %v158 = vpack.c.b16 %v147, %v146
    %v159 = vpack.c.b16 %v149, %v148
    %v160 = vpack.c.b16 %v151, %v150
    %v161 = vpack.c.b16 %v153, %v152
    %170 = vmatprep.subr.bf16.mxu0 0
    %171 = vmatpush1.bf16.msra.mxu0 %v154
    %172 = vmatprep.subr.bf16.mxu0 0
    %173 = vmatpush1.bf16.msra.mxu0 %v155
    %174 = vmatprep.subr.bf16.mxu0 0
    %175 = vmatpush1.bf16.msra.mxu0 %v156
    %176 = vmatprep.subr.bf16.mxu0 0
    %177 = vmatpush1.bf16.msra.mxu0 %v157
    %178 = vmatprep.subr.bf16.mxu0 0
    %179 = vmatpush1.bf16.msra.mxu0 %v158
    %180 = vmatprep.subr.bf16.mxu0 0
    %181 = vmatpush1.bf16.msra.mxu0 %v159
    %182 = vmatprep.subr.bf16.mxu0 0
    %183 = vmatpush1.bf16.msra.mxu0 %v160
    %184 = vmatprep.subr.bf16.mxu0 0
    %185 = vmatpush1.bf16.msra.mxu0 %v161
    %186 = vmatprep.subr.bf16.mxu0 0
    %187 = vmatpush1.bf16.msra.mxu0 0
    %188 = vmatprep.subr.bf16.mxu0 0
    %189 = vmatpush1.bf16.msra.mxu0 0
    %190 = vmatprep.subr.bf16.mxu0 0
    %191 = vmatpush1.bf16.msra.mxu0 0
    %192 = vmatprep.subr.bf16.mxu0 0
    %193 = vmatpush1.bf16.msra.mxu0 0
    %194 = vmatprep.subr.bf16.mxu0 0
    %195 = vmatpush1.bf16.msra.mxu0 0
    %196 = vmatprep.subr.bf16.mxu0 0
    %197 = vmatpush1.bf16.msra.mxu0 0
    %198 = vmatprep.subr.bf16.mxu0 0
    %199 = vmatpush1.bf16.msra.mxu0 0
    %200 = vmatprep.subr.bf16.mxu0 0
    %201 = vmatpush1.bf16.msra.mxu0 0
    %202 = vmatprep.mubr.bf16.mxu0 0
    %203 = vmatmul.mubr.bf16.gmra.mrb[0].mxu0 %v120
    %v204 = vpop.f32.mrb[0].mxu0
    %v205 = vadd.f32 0.0, %v204
    %v206 = vpop.f32.mrb[0].mxu0
    %v207 = vpop.f32.mrb[0].mxu0
    %v208 = vadd.f32 0.0, %v207
    %v209 = vpop.f32.mrb[0].mxu0
    %210 = vdwg.mxu0
    %v211 = vpack.c.bf16 %v205, %v205
    %v212 = vpack.c.bf16 %v208, %v208
    %v229 = vunpack.c.l.b16 %v84
    %v230 = vunpack.c.l.b16 %v85
    %v231 = vunpack.c.l.b16 %v86
    %v232 = vunpack.c.l.b16 %v87
    %v233 = vunpack.c.l.b16 %v88
    %v234 = vunpack.c.l.b16 %v89
    %v235 = vunpack.c.l.b16 %v90
    %v236 = vunpack.c.l.b16 %v91
    %v237 = vunpack.c.l.b16 %v92
    %v238 = vunpack.c.l.b16 %v93
    %v239 = vunpack.c.l.b16 %v94
    %v240 = vunpack.c.l.b16 %v95
    %v241 = vunpack.c.l.b16 %v96
    %v242 = vunpack.c.l.b16 %v97
    %v243 = vunpack.c.l.b16 %v98
    %v244 = vunpack.c.l.b16 %v99
    %v245 = vpack.c.b16 %v230, %v229
    %v246 = vpack.c.b16 %v232, %v231
    %v247 = vpack.c.b16 %v234, %v233
    %v248 = vpack.c.b16 %v236, %v235
    %v249 = vpack.c.b16 %v238, %v237
    %v250 = vpack.c.b16 %v240, %v239
    %v251 = vpack.c.b16 %v242, %v241
    %v252 = vpack.c.b16 %v244, %v243
    %261 = vmatprep.subr.bf16.mxu0 0
    %262 = vmatpush1.bf16.msra.mxu0 %v245
    %263 = vmatprep.subr.bf16.mxu0 0
    %264 = vmatpush1.bf16.msra.mxu0 %v246
    %265 = vmatprep.subr.bf16.mxu0 0
    %266 = vmatpush1.bf16.msra.mxu0 %v247
    %267 = vmatprep.subr.bf16.mxu0 0
    %268 = vmatpush1.bf16.msra.mxu0 %v248
    %269 = vmatprep.subr.bf16.mxu0 0
    %270 = vmatpush1.bf16.msra.mxu0 %v249
    %271 = vmatprep.subr.bf16.mxu0 0
    %272 = vmatpush1.bf16.msra.mxu0 %v250
    %273 = vmatprep.subr.bf16.mxu0 0
    %274 = vmatpush1.bf16.msra.mxu0 %v251
    %275 = vmatprep.subr.bf16.mxu0 0
    %276 = vmatpush1.bf16.msra.mxu0 %v252
    %277 = vmatprep.subr.bf16.mxu0 0
    %278 = vmatpush1.bf16.msra.mxu0 0
    %279 = vmatprep.subr.bf16.mxu0 0
    %280 = vmatpush1.bf16.msra.mxu0 0
    %281 = vmatprep.subr.bf16.mxu0 0
    %282 = vmatpush1.bf16.msra.mxu0 0
    %283 = vmatprep.subr.bf16.mxu0 0
    %284 = vmatpush1.bf16.msra.mxu0 0
    %285 = vmatprep.subr.bf16.mxu0 0
    %286 = vmatpush1.bf16.msra.mxu0 0
    %287 = vmatprep.subr.bf16.mxu0 0
    %288 = vmatpush1.bf16.msra.mxu0 0
    %289 = vmatprep.subr.bf16.mxu0 0
    %290 = vmatpush1.bf16.msra.mxu0 0
    %291 = vmatprep.subr.bf16.mxu0 0
    %292 = vmatpush1.bf16.msra.mxu0 0
    %293 = vmatprep.mubr.bf16.mxu0 0
    %294 = vmatmul.mubr.bf16.gmra.mrb[0].mxu0 %v120
    %v295 = vpop.f32.mrb[0].mxu0
    %v296 = vadd.f32 0.0, %v295
    %v297 = vpop.f32.mrb[0].mxu0
    %v298 = vpop.f32.mrb[0].mxu0
    %v299 = vadd.f32 0.0, %v298
    %v300 = vpop.f32.mrb[0].mxu0
    %301 = vdwg.mxu0
    %v302 = vpack.c.bf16 %v296, %v296
    %v303 = vpack.c.bf16 %v299, %v299
    %vm304 = vcmask 64512
    %v306 = vsel %vm304, %v61, 0
    %vm308 = vcmask 1043456
    %v310 = vsel %vm308, %v302, 0
    %312 = vmatprep.subr.bf16.mxu0 0
    %313 = vmatpush1.bf16.msra.mxu0 %v310
    %314 = vmatprep.subr.bf16.mxu0 0
    %315 = vmatpush1.bf16.msra.mxu0 0
    %316 = vmatprep.subr.bf16.mxu0 0
    %317 = vmatpush1.bf16.msra.mxu0 0
    %318 = vmatprep.subr.bf16.mxu0 0
    %319 = vmatpush1.bf16.msra.mxu0 0
    %320 = vmatprep.subr.bf16.mxu0 0
    %321 = vmatpush1.bf16.msra.mxu0 0
    %322 = vmatprep.subr.bf16.mxu0 0
    %323 = vmatpush1.bf16.msra.mxu0 0
    %324 = vmatprep.subr.bf16.mxu0 0
    %325 = vmatpush1.bf16.msra.mxu0 0
    %326 = vmatprep.subr.bf16.mxu0 0
    %327 = vmatpush1.bf16.msra.mxu0 0
    %328 = vmatprep.subr.bf16.mxu0 0
    %329 = vmatpush1.bf16.msra.mxu0 0
    %330 = vmatprep.subr.bf16.mxu0 0
    %331 = vmatpush1.bf16.msra.mxu0 0
    %332 = vmatprep.subr.bf16.mxu0 0
    %333 = vmatpush1.bf16.msra.mxu0 0
    %334 = vmatprep.subr.bf16.mxu0 0
    %335 = vmatpush1.bf16.msra.mxu0 0
    %336 = vmatprep.subr.bf16.mxu0 0
    %337 = vmatpush1.bf16.msra.mxu0 0
    %338 = vmatprep.subr.bf16.mxu0 0
    %339 = vmatpush1.bf16.msra.mxu0 0
    %340 = vmatprep.subr.bf16.mxu0 0
    %341 = vmatpush1.bf16.msra.mxu0 0
    %342 = vmatprep.subr.bf16.mxu0 0
    %343 = vmatpush1.bf16.msra.mxu0 0
    %344 = vmatprep.mubr.bf16.mxu0 0
    %345 = vmatmul.mubr.bf16.gmra.mrb[0].mxu0 %v306
    %v346 = vpop.f32.mrb[0].mxu0
    %v347 = vadd.f32 0.0, %v346
    %v348 = vpop.f32.mrb[0].mxu0
    %v349 = vpop.f32.mrb[0].mxu0
    %v350 = vpop.f32.mrb[0].mxu0
    %351 = vdwg.mxu0
    %v353 = vsel %vm304, %v64, 0
    %v356 = vsel %vm308, %v303, 0
    %358 = vmatprep.subr.bf16.mxu0 0
    %359 = vmatpush1.bf16.msra.mxu0 %v356
    %360 = vmatprep.subr.bf16.mxu0 0
    %361 = vmatpush1.bf16.msra.mxu0 0
    %362 = vmatprep.subr.bf16.mxu0 0
    %363 = vmatpush1.bf16.msra.mxu0 0
    %364 = vmatprep.subr.bf16.mxu0 0
    %365 = vmatpush1.bf16.msra.mxu0 0
    %366 = vmatprep.subr.bf16.mxu0 0
    %367 = vmatpush1.bf16.msra.mxu0 0
    %368 = vmatprep.subr.bf16.mxu0 0
    %369 = vmatpush1.bf16.msra.mxu0 0
    %370 = vmatprep.subr.bf16.mxu0 0
    %371 = vmatpush1.bf16.msra.mxu0 0
    %372 = vmatprep.subr.bf16.mxu0 0
    %373 = vmatpush1.bf16.msra.mxu0 0
    %374 = vmatprep.subr.bf16.mxu0 0
    %375 = vmatpush1.bf16.msra.mxu0 0
    %376 = vmatprep.subr.bf16.mxu0 0
    %377 = vmatpush1.bf16.msra.mxu0 0
    %378 = vmatprep.subr.bf16.mxu0 0
    %379 = vmatpush1.bf16.msra.mxu0 0
    %380 = vmatprep.subr.bf16.mxu0 0
    %381 = vmatpush1.bf16.msra.mxu0 0
    %382 = vmatprep.subr.bf16.mxu0 0
    %383 = vmatpush1.bf16.msra.mxu0 0
    %384 = vmatprep.subr.bf16.mxu0 0
    %385 = vmatpush1.bf16.msra.mxu0 0
    %386 = vmatprep.subr.bf16.mxu0 0
    %387 = vmatpush1.bf16.msra.mxu0 0
    %388 = vmatprep.subr.bf16.mxu0 0
    %389 = vmatpush1.bf16.msra.mxu0 0
    %390 = vmatprep.mubr.bf16.mxu0 0
    %391 = vmatmul.mubr.bf16.gmra.mrb[0].mxu0 %v353
    %v392 = vpop.f32.mrb[0].mxu0
    %v393 = vadd.f32 0.0, %v392
    %v394 = vpop.f32.mrb[0].mxu0
    %v395 = vpop.f32.mrb[0].mxu0
    %v396 = vpop.f32.mrb[0].mxu0
    %397 = vdwg.mxu0
    %v399 = vsel %vm304, %v60, 0
    %v402 = vsel %vm308, %v211, 0
    %404 = vmatprep.subr.bf16.mxu0 0
    %405 = vmatpush1.bf16.msra.mxu0 %v402
    %406 = vmatprep.subr.bf16.mxu0 0
    %407 = vmatpush1.bf16.msra.mxu0 0
    %408 = vmatprep.subr.bf16.mxu0 0
    %409 = vmatpush1.bf16.msra.mxu0 0
    %410 = vmatprep.subr.bf16.mxu0 0
    %411 = vmatpush1.bf16.msra.mxu0 0
    %412 = vmatprep.subr.bf16.mxu0 0
    %413 = vmatpush1.bf16.msra.mxu0 0
    %414 = vmatprep.subr.bf16.mxu0 0
    %415 = vmatpush1.bf16.msra.mxu0 0
    %416 = vmatprep.subr.bf16.mxu0 0
    %417 = vmatpush1.bf16.msra.mxu0 0
    %418 = vmatprep.subr.bf16.mxu0 0
    %419 = vmatpush1.bf16.msra.mxu0 0
    %420 = vmatprep.subr.bf16.mxu0 0
    %421 = vmatpush1.bf16.msra.mxu0 0
    %422 = vmatprep.subr.bf16.mxu0 0
    %423 = vmatpush1.bf16.msra.mxu0 0
    %424 = vmatprep.subr.bf16.mxu0 0
    %425 = vmatpush1.bf16.msra.mxu0 0
    %426 = vmatprep.subr.bf16.mxu0 0
    %427 = vmatpush1.bf16.msra.mxu0 0
    %428 = vmatprep.subr.bf16.mxu0 0
    %429 = vmatpush1.bf16.msra.mxu0 0
    %430 = vmatprep.subr.bf16.mxu0 0
    %431 = vmatpush1.bf16.msra.mxu0 0
    %432 = vmatprep.subr.bf16.mxu0 0
    %433 = vmatpush1.bf16.msra.mxu0 0
    %434 = vmatprep.subr.bf16.mxu0 0
    %435 = vmatpush1.bf16.msra.mxu0 0
    %436 = vmatprep.mubr.bf16.mxu0 0
    %437 = vmatmul.mubr.bf16.gmra.mrb[0].mxu0 %v399
    %v438 = vpop.f32.mrb[0].mxu0
    %v439 = vadd.f32 %v347, %v438
    %v440 = vpop.f32.mrb[0].mxu0
    %v441 = vpop.f32.mrb[0].mxu0
    %v442 = vpop.f32.mrb[0].mxu0
    %443 = vdwg.mxu0
    %v445 = vsel %vm304, %v63, 0
    %v448 = vsel %vm308, %v212, 0
    %450 = vmatprep.subr.bf16.mxu0 0
    %451 = vmatpush1.bf16.msra.mxu0 %v448
    %452 = vmatprep.subr.bf16.mxu0 0
    %453 = vmatpush1.bf16.msra.mxu0 0
    %454 = vmatprep.subr.bf16.mxu0 0
    %455 = vmatpush1.bf16.msra.mxu0 0
    %456 = vmatprep.subr.bf16.mxu0 0
    %457 = vmatpush1.bf16.msra.mxu0 0
    %458 = vmatprep.subr.bf16.mxu0 0
    %459 = vmatpush1.bf16.msra.mxu0 0
    %460 = vmatprep.subr.bf16.mxu0 0
    %461 = vmatpush1.bf16.msra.mxu0 0
    %462 = vmatprep.subr.bf16.mxu0 0
    %463 = vmatpush1.bf16.msra.mxu0 0
    %464 = vmatprep.subr.bf16.mxu0 0
    %465 = vmatpush1.bf16.msra.mxu0 0
    %466 = vmatprep.subr.bf16.mxu0 0
    %467 = vmatpush1.bf16.msra.mxu0 0
    %468 = vmatprep.subr.bf16.mxu0 0
    %469 = vmatpush1.bf16.msra.mxu0 0
    %470 = vmatprep.subr.bf16.mxu0 0
    %471 = vmatpush1.bf16.msra.mxu0 0
    %472 = vmatprep.subr.bf16.mxu0 0
    %473 = vmatpush1.bf16.msra.mxu0 0
    %474 = vmatprep.subr.bf16.mxu0 0
    %475 = vmatpush1.bf16.msra.mxu0 0
    %476 = vmatprep.subr.bf16.mxu0 0
    %477 = vmatpush1.bf16.msra.mxu0 0
    %478 = vmatprep.subr.bf16.mxu0 0
    %479 = vmatpush1.bf16.msra.mxu0 0
    %480 = vmatprep.subr.bf16.mxu0 0
    %481 = vmatpush1.bf16.msra.mxu0 0
    %482 = vmatprep.mubr.bf16.mxu0 0
    %483 = vmatmul.mubr.bf16.gmra.mrb[0].mxu0 %v445
    %v484 = vpop.f32.mrb[0].mxu0
    %v485 = vadd.f32 %v393, %v484
    %v486 = vpop.f32.mrb[0].mxu0
    %v487 = vpop.f32.mrb[0].mxu0
    %v488 = vpop.f32.mrb[0].mxu0
    %489 = vdwg.mxu0
    %v506 = vunpack.c.l.b16 %v100
    %v507 = vunpack.c.l.b16 %v101
    %v508 = vunpack.c.l.b16 %v102
    %v509 = vunpack.c.l.b16 %v103
    %v510 = vunpack.c.l.b16 %v104
    %v511 = vunpack.c.l.b16 %v105
    %v512 = vunpack.c.l.b16 %v106
    %v513 = vunpack.c.l.b16 %v107
    %v514 = vunpack.c.l.b16 %v108
    %v515 = vunpack.c.l.b16 %v109
    %v516 = vunpack.c.l.b16 %v110
    %v517 = vunpack.c.l.b16 %v111
    %v518 = vunpack.c.l.b16 %v112
    %v519 = vunpack.c.l.b16 %v113
    %v520 = vunpack.c.l.b16 %v114
    %v521 = vunpack.c.l.b16 %v115
    %v522 = vpack.c.b16 %v507, %v506
    %v523 = vpack.c.b16 %v509, %v508
    %v524 = vpack.c.b16 %v511, %v510
    %v525 = vpack.c.b16 %v513, %v512
    %v526 = vpack.c.b16 %v515, %v514
    %v527 = vpack.c.b16 %v517, %v516
    %v528 = vpack.c.b16 %v519, %v518
    %v529 = vpack.c.b16 %v521, %v520
    %538 = vmatprep.subr.bf16.mxu0 0
    %539 = vmatpush1.bf16.msra.mxu0 %v522
    %540 = vmatprep.subr.bf16.mxu0 0
    %541 = vmatpush1.bf16.msra.mxu0 %v523
    %542 = vmatprep.subr.bf16.mxu0 0
    %543 = vmatpush1.bf16.msra.mxu0 %v524
    %544 = vmatprep.subr.bf16.mxu0 0
    %545 = vmatpush1.bf16.msra.mxu0 %v525
    %546 = vmatprep.subr.bf16.mxu0 0
    %547 = vmatpush1.bf16.msra.mxu0 %v526
    %548 = vmatprep.subr.bf16.mxu0 0
    %549 = vmatpush1.bf16.msra.mxu0 %v527
    %550 = vmatprep.subr.bf16.mxu0 0
    %551 = vmatpush1.bf16.msra.mxu0 %v528
    %552 = vmatprep.subr.bf16.mxu0 0
    %553 = vmatpush1.bf16.msra.mxu0 %v529
    %554 = vmatprep.subr.bf16.mxu0 0
    %555 = vmatpush1.bf16.msra.mxu0 0
    %556 = vmatprep.subr.bf16.mxu0 0
    %557 = vmatpush1.bf16.msra.mxu0 0
    %558 = vmatprep.subr.bf16.mxu0 0
    %559 = vmatpush1.bf16.msra.mxu0 0
    %560 = vmatprep.subr.bf16.mxu0 0
    %561 = vmatpush1.bf16.msra.mxu0 0
    %562 = vmatprep.subr.bf16.mxu0 0
    %563 = vmatpush1.bf16.msra.mxu0 0
    %564 = vmatprep.subr.bf16.mxu0 0
    %565 = vmatpush1.bf16.msra.mxu0 0
    %566 = vmatprep.subr.bf16.mxu0 0
    %567 = vmatpush1.bf16.msra.mxu0 0
    %568 = vmatprep.subr.bf16.mxu0 0
    %569 = vmatpush1.bf16.msra.mxu0 0
    %570 = vmatprep.mubr.bf16.mxu0 0
    %571 = vmatmul.mubr.bf16.gmra.mrb[0].mxu0 %v120
    %v572 = vpop.f32.mrb[0].mxu0
    %v573 = vadd.f32 0.0, %v572
    %v574 = vpop.f32.mrb[0].mxu0
    %v575 = vpop.f32.mrb[0].mxu0
    %v576 = vadd.f32 0.0, %v575
    %v577 = vpop.f32.mrb[0].mxu0
    %578 = vdwg.mxu0
    %v579 = vpack.c.bf16 %v573, %v573
    %v580 = vpack.c.bf16 %v576, %v576
    %v582 = vsel %vm304, %v62, 0
    %v585 = vsel %vm308, %v579, 0
    %587 = vmatprep.subr.bf16.mxu0 0
    %588 = vmatpush1.bf16.msra.mxu0 %v585
    %589 = vmatprep.subr.bf16.mxu0 0
    %590 = vmatpush1.bf16.msra.mxu0 0
    %591 = vmatprep.subr.bf16.mxu0 0
    %592 = vmatpush1.bf16.msra.mxu0 0
    %593 = vmatprep.subr.bf16.mxu0 0
    %594 = vmatpush1.bf16.msra.mxu0 0
    %595 = vmatprep.subr.bf16.mxu0 0
    %596 = vmatpush1.bf16.msra.mxu0 0
    %597 = vmatprep.subr.bf16.mxu0 0
    %598 = vmatpush1.bf16.msra.mxu0 0
    %599 = vmatprep.subr.bf16.mxu0 0
    %600 = vmatpush1.bf16.msra.mxu0 0
    %601 = vmatprep.subr.bf16.mxu0 0
    %602 = vmatpush1.bf16.msra.mxu0 0
    %603 = vmatprep.subr.bf16.mxu0 0
    %604 = vmatpush1.bf16.msra.mxu0 0
    %605 = vmatprep.subr.bf16.mxu0 0
    %606 = vmatpush1.bf16.msra.mxu0 0
    %607 = vmatprep.subr.bf16.mxu0 0
    %608 = vmatpush1.bf16.msra.mxu0 0
    %609 = vmatprep.subr.bf16.mxu0 0
    %610 = vmatpush1.bf16.msra.mxu0 0
    %611 = vmatprep.subr.bf16.mxu0 0
    %612 = vmatpush1.bf16.msra.mxu0 0
    %613 = vmatprep.subr.bf16.mxu0 0
    %614 = vmatpush1.bf16.msra.mxu0 0
    %615 = vmatprep.subr.bf16.mxu0 0
    %616 = vmatpush1.bf16.msra.mxu0 0
    %617 = vmatprep.subr.bf16.mxu0 0
    %618 = vmatpush1.bf16.msra.mxu0 0
    %619 = vmatprep.mubr.bf16.mxu0 0
    %620 = vmatmul.mubr.bf16.gmra.mrb[0].mxu0 %v582
    %v621 = vpop.f32.mrb[0].mxu0
    %v622 = vadd.f32 0.0, %v621
    %v623 = vpop.f32.mrb[0].mxu0
    %v624 = vpop.f32.mrb[0].mxu0
    %v625 = vpop.f32.mrb[0].mxu0
    %626 = vdwg.mxu0
    %v628 = vsel %vm304, %v65, 0
    %v631 = vsel %vm308, %v580, 0
    %633 = vmatprep.subr.bf16.mxu0 0
    %634 = vmatpush1.bf16.msra.mxu0 %v631
    %635 = vmatprep.subr.bf16.mxu0 0
    %636 = vmatpush1.bf16.msra.mxu0 0
    %637 = vmatprep.subr.bf16.mxu0 0
    %638 = vmatpush1.bf16.msra.mxu0 0
    %639 = vmatprep.subr.bf16.mxu0 0
    %640 = vmatpush1.bf16.msra.mxu0 0
    %641 = vmatprep.subr.bf16.mxu0 0
    %642 = vmatpush1.bf16.msra.mxu0 0
    %643 = vmatprep.subr.bf16.mxu0 0
    %644 = vmatpush1.bf16.msra.mxu0 0
    %645 = vmatprep.subr.bf16.mxu0 0
    %646 = vmatpush1.bf16.msra.mxu0 0
    %647 = vmatprep.subr.bf16.mxu0 0
    %648 = vmatpush1.bf16.msra.mxu0 0
    %649 = vmatprep.subr.bf16.mxu0 0
    %650 = vmatpush1.bf16.msra.mxu0 0
    %651 = vmatprep.subr.bf16.mxu0 0
    %652 = vmatpush1.bf16.msra.mxu0 0
    %653 = vmatprep.subr.bf16.mxu0 0
    %654 = vmatpush1.bf16.msra.mxu0 0
    %655 = vmatprep.subr.bf16.mxu0 0
    %656 = vmatpush1.bf16.msra.mxu0 0
    %657 = vmatprep.subr.bf16.mxu0 0
    %658 = vmatpush1.bf16.msra.mxu0 0
    %659 = vmatprep.subr.bf16.mxu0 0
    %660 = vmatpush1.bf16.msra.mxu0 0
    %661 = vmatprep.subr.bf16.mxu0 0
    %662 = vmatpush1.bf16.msra.mxu0 0
    %663 = vmatprep.subr.bf16.mxu0 0
    %664 = vmatpush1.bf16.msra.mxu0 0
    %665 = vmatprep.mubr.bf16.mxu0 0
    %666 = vmatmul.mubr.bf16.gmra.mrb[0].mxu0 %v628
    %v667 = vpop.f32.mrb[0].mxu0
    %v668 = vadd.f32 0.0, %v667
    %v669 = vpop.f32.mrb[0].mxu0
    %v670 = vpop.f32.mrb[0].mxu0
    %v671 = vpop.f32.mrb[0].mxu0
    %672 = vdwg.mxu0
    %v673 = vadd.f32 %v439, %v622
    %v674 = vadd.f32 %v485, %v668
    %v675 = vld [vmem:[%s3] sm:$0x1]
    %v677 = vlaneseq
    %v678 = vshrl.u32 %v677, 7
    %v679 = vsub.s32 0, %v678
    %v680 = vrot.slane %v675, %v679
    %v682 = vadd.f32 %v673, %v680
    %v683 = vadd.f32 %v674, %v680
    %v684 = vmax.f32 %v682, 0.0
    %v685 = vmax.f32 %v683, 0.0
    %v686 = vpack.c.bf16 %v684, %v684
    %v687 = vpack.c.bf16 %v685, %v685
    %688 = vst [vmem:[#allocation8] sm:$0xf] %v686
    %689 = vst [vmem:[#allocation8 + $0x4] sm:$0xf] %v687
    // Predicated region
    $region30: #{tpu_custom_call.1} parent=1 // pred_check
      _
    $region31: #{tpu_custom_call.1} parent=1 // pred_check_branch
      %691 = sbr.rel (0) target = $region33
    $region32: #{tpu_custom_call.1} parent=1 // pred_region
      %s693 = ssub.s32 128, 128
      %694 = vsyncadd [#allocation4], %s693
      %s695 = sshll.u32 [#allocation8], 4
      %s696 = int_to_ptr.vmem [resolvable:$true] %s695
      %701 = dma.vmem_to_hbm [thread:$0]  %s696, 128, %s4, [#allocation4], 64, 64, 4
    $region33: #{tpu_custom_call.1} parent=1 // pred_fallthru
      _
    // Predicated region
    $region34: #{tpu_custom_call.1} parent=1 // pred_check
      _
    $region35: #{tpu_custom_call.1} parent=1 // pred_check_branch
      %703 = sbr.rel (0) target = $region37
    $region36: #{tpu_custom_call.1} parent=1 // pred_region
      %704 = dma.done [#allocation4], 128
    $region37: #{tpu_custom_call.1} parent=1 // pred_fallthru
      _
    %705 = vsyncpa [#allocation3], 1
    %706 = vsyncpa [#allocation6], 1
    %707 = vsyncpa [#allocation4], 1

</llo_original>
